<compile_context>
chip_gen: v6e
topology: v6e:2x2x1
jax: 0.10.0
libtpu: 0.0.40
codegen_flags: <defaults>
</compile_context>

<pallas_src>
import jax
import jax.numpy as jnp
import numpy as np
from jax import lax
from jax.experimental import pallas as pl
from jax.experimental.pallas import tpu as pltpu

LANES = 128
TARGET_BM = 256  # target MXU M rows per grid step (v6e/v7x MXU height)


def _round_up(x, m):
    return ((x + m - 1) // m) * m


def _fused_conv_relu_kernel(p_ref, w1e_ref, b1e_ref, w2c_ref, b2p_ref, o_ref):
    """relu(conv2(relu(conv1(x)))) as two chained MXU matmuls.

    p_ref  : (BM, DH*DW)       9x9 input patches (rows = output pixels, any image)
    w1e_ref: (DH*DW, K_PAD)    expanded conv1 weights (emits conv2's im2col), K padded
    b1e_ref: (1, K_PAD)        conv1 bias tiled per conv2 tap (zero in padding)
    w2c_ref: (K_PAD, CO_PAD)   conv2 weights, (tap,cin)-major rows, Cout padded to 128
    b2p_ref: (1, CO_PAD)       conv2 bias, zero padded
    o_ref  : (BM, CO_PAD)      lane-dense output block
    """
    p = p_ref[...]
    # conv1 (+ bias + ReLU); result already in conv2-im2col layout, stays in VMEM.
    h = jnp.dot(p, w1e_ref[...], preferred_element_type=jnp.float32)
    h = jnp.maximum(h + b1e_ref[...], 0.0)
    # conv2 (+ bias + ReLU); single K=512 matmul, 128-lane-dense output store.
    y = jnp.dot(h.astype(w2c_ref.dtype), w2c_ref[...],
                preferred_element_type=jnp.float32)
    o_ref[...] = jnp.maximum(y + b2p_ref[...], 0.0)


def _expand_conv1_weights(w1_hwio, b1, kh2, kw2, k_pad, dtype):
    """W1e[(dh,dw),(s,t,c)] = w1[dh-s, dw-t, 0, c] (0 out of range), K padded."""
    kh1, kw1, cin1, c1 = w1_hwio.shape
    assert cin1 == 1
    dh, dw = kh1 + kh2 - 1, kw1 + kw2 - 1
    k = kh2 * kw2 * c1
    w1_sq = w1_hwio[:, :, 0, :].astype(jnp.float32)            # (kh1, kw1, c1)
    w1e = jnp.zeros((dh, dw, kh2, kw2, c1), jnp.float32)
    for s in range(kh2):                                       # 25 static trace-time sets
        for t in range(kw2):
            w1e = w1e.at[s:s + kh1, t:t + kw1, s, t, :].set(w1_sq)
    w1e = w1e.reshape(dh * dw, k)
    w1e = jnp.pad(w1e, ((0, 0), (0, k_pad - k))).astype(dtype)
    b1e = jnp.tile(b1.astype(jnp.float32), kh2 * kw2).reshape(1, k)
    b1e = jnp.pad(b1e, ((0, 0), (0, k_pad - k)))               # stays f32
    return w1e, b1e


def _pack_conv2_weights(w2_hwio, b2, k_pad, co_pad, dtype):
    kh2, kw2, c1, c2 = w2_hwio.shape
    k = kh2 * kw2 * c1
    w2c = w2_hwio.reshape(k, c2).astype(jnp.float32)
    w2c = jnp.pad(w2c, ((0, k_pad - k), (0, co_pad - c2))).astype(dtype)
    b2p = jnp.pad(b2.astype(jnp.float32), (0, co_pad - c2)).reshape(1, co_pad)
    return w2c, b2p


def fused_double_conv_relu(x_nchw, w1_hwio, b1, w2_hwio, b2,
                           *, compute_dtype=jnp.float32):
    n, cin, h, w = x_nchw.shape
    assert cin == 1
    kh1, kw1, _, c1 = w1_hwio.shape
    kh2, kw2, c1b, c2 = w2_hwio.shape
    assert c1b == c1
    h1, w1_ = h - kh1 + 1, w - kw1 + 1                 # conv1 output spatial dims
    h2, w2_ = h1 - kh2 + 1, w1_ - kw2 + 1              # conv2 output spatial dims
    dh, dw = kh1 + kh2 - 1, kw1 + kw2 - 1              # combined receptive field (9x9)
    k = kh2 * kw2 * c1                                 # conv2 im2col K (=500)
    k_pad = _round_up(k, LANES)                        # 500 -> 512 (clean vreg groups)
    co_pad = _round_up(c2, LANES)                      # 20 -> 128 (lane-dense store)

    # --- im2col over the combined 9x9 field: one fused XLA gather-conv, exact copy.
    x_nhwc = jnp.transpose(x_nchw, (0, 2, 3, 1)).astype(jnp.float32)   # (n, h, w, 1)
    patches = lax.conv_general_dilated_patches(
        x_nhwc, (dh, dw), (1, 1), "VALID",
        dimension_numbers=("NHWC", "HWIO", "NHWC"),
        precision=lax.Precision.HIGHEST)               # (n, h2, w2, dh*dw), tap = a*dw+b
    total_rows = n * h2 * w2_
    p = patches.reshape(total_rows, dh * dw).astype(compute_dtype)

    # --- pack multiple images per grid step: M-blocks of up to 256 rows.
    bm_block = min(TARGET_BM, _round_up(total_rows, 8))
    rows_padded = _round_up(total_rows, bm_block)
    if rows_padded > total_rows:
        p = jnp.pad(p, ((0, rows_padded - total_rows), (0, 0)))
    grid = (rows_padded // bm_block,)

    w1e, b1e = _expand_conv1_weights(w1_hwio, b1, kh2, kw2, k_pad, compute_dtype)
    w2c, b2p = _pack_conv2_weights(w2_hwio, b2, k_pad, co_pad, compute_dtype)

    out_flat = pl.pallas_call(
        _fused_conv_relu_kernel,
        out_shape=jax.ShapeDtypeStruct((rows_padded, co_pad), jnp.float32),
        grid=grid,
        in_specs=[
            pl.BlockSpec((bm_block, dh * dw), lambda i: (i, 0)),
            pl.BlockSpec((dh * dw, k_pad), lambda i: (0, 0)),
            pl.BlockSpec((1, k_pad), lambda i: (0, 0)),
            pl.BlockSpec((k_pad, co_pad), lambda i: (0, 0)),
            pl.BlockSpec((1, co_pad), lambda i: (0, 0)),
        ],
        out_specs=pl.BlockSpec((bm_block, co_pad), lambda i: (i, 0)),
        compiler_params=pltpu.CompilerParams(
            dimension_semantics=("parallel",)),        # shards blocks across v7x's 2 TCs
    )(p, w1e, b1e, w2c, b2p)

    # Drop row/channel padding and return NCHW to match the PyTorch module.
    # (Large-batch consumers could take the padded (rows, 128) slab directly and
    #  skip these two extra HBM passes.)
    out = out_flat[:total_rows, :c2].reshape(n, h2, w2_, c2)
    return jnp.transpose(out, (0, 3, 1, 2))            # NHWC -> NCHW


def init_conv_params(key, cin, cout, kk):
    """Deterministic init mimicking nn.Conv2d default. Weight in HWIO layout."""
    kw_key, kb_key = jax.random.split(key)
    fan_in = cin * kk * kk
    bound_w = float(np.sqrt(6.0 / fan_in))
    bound_b = float(1.0 / np.sqrt(fan_in))
    w = jax.random.uniform(kw_key, (kk, kk, cin, cout), jnp.float32, -bound_w, bound_w)
    b = jax.random.uniform(kb_key, (cout,), jnp.float32, -bound_b, bound_b)
    return w, b


def model_forward(x_nchw, params):
    """Matches Model.forward: relu(conv2(relu(conv1(x)))). x_nchw: (N,1,H,W)."""
    (w1, b1), (w2, b2) = params["conv1"], params["conv2"]
    return fused_double_conv_relu(x_nchw, w1, b1, w2, b2)


def _reference_forward(x_nchw, params):
    """Pure-JAX reference using lax.conv_general_dilated."""
    (w1, b1), (w2, b2) = params["conv1"], params["conv2"]
    dn = ("NHWC", "HWIO", "NHWC")
    x = jnp.transpose(x_nchw, (0, 2, 3, 1))
    x = lax.conv_general_dilated(x, w1, (1, 1), "VALID", dimension_numbers=dn)
    x = jnp.maximum(x + b1, 0.0)
    x = lax.conv_general_dilated(x, w2, (1, 1), "VALID", dimension_numbers=dn)
    x = jnp.maximum(x + b2, 0.0)
    return jnp.transpose(x, (0, 3, 1, 2))


if __name__ == "__main__":
    key = jax.random.PRNGKey(0)
    k_x, k_c1, k_c2, k_c3 = jax.random.split(key, 4)

    params = {
        "conv1": init_conv_params(k_c1, 1, 20, 5),
        "conv2": init_conv_params(k_c2, 20, 20, 5),
        "conv3": init_conv_params(k_c3, 20, 20, 5),  # defined in __init__, unused in forward
    }

    # Small input consistent with Conv2d(1, 20, 5): N=2, C=1, H=W=16.
    x = jax.random.normal(k_x, (2, 1, 16, 16), jnp.float32)

    fwd = jax.jit(model_forward)
    out = jax.block_until_ready(fwd(x, params))
    assert out.shape == (2, 20, 8, 8), out.shape

    ref = jax.block_until_ready(_reference_forward(x, params))
    np.testing.assert_allclose(np.asarray(out), np.asarray(ref), rtol=1e-5, atol=1e-5)

    print("KERNEL_OK")
</pallas_src>

<mosaic_0001>
module attributes {stable_mosaic.version = 11 : i64} {
  func.func @_fused_conv_relu_kernel(%arg0: i32, %arg1: memref<128x81xf32, #tpu.memory_space<vmem>>, %arg2: memref<81x512xf32, #tpu.memory_space<vmem>>, %arg3: memref<1x512xf32, #tpu.memory_space<vmem>>, %arg4: memref<512x128xf32, #tpu.memory_space<vmem>>, %arg5: memref<1x128xf32, #tpu.memory_space<vmem>>, %arg6: memref<128x128xf32, #tpu.memory_space<vmem>>) attributes {dimension_semantics = [#tpu.dimension_semantics<parallel>], iteration_bounds = array<i64: 1>, scalar_prefetch = 0 : i64, scratch_operands = 0 : i64, tpu.core_type = #tpu.core_type<tc>, window_params = [{transform_indices = @transform_0, window_bounds = array<i64: 128, 81>}, {pipeline_mode = #tpu.pipeline_mode<synchronous>, transform_indices = @transform_1, window_bounds = array<i64: 81, 512>}, {pipeline_mode = #tpu.pipeline_mode<synchronous>, transform_indices = @transform_2, window_bounds = array<i64: 1, 512>}, {pipeline_mode = #tpu.pipeline_mode<synchronous>, transform_indices = @transform_3, window_bounds = array<i64: 512, 128>}, {pipeline_mode = #tpu.pipeline_mode<synchronous>, transform_indices = @transform_4, window_bounds = array<i64: 1, 128>}, {transform_indices = @transform_5, window_bounds = array<i64: 128, 128>}]} {
    %c0 = arith.constant 0 : index
    %c0_0 = arith.constant 0 : index
    %0 = vector.load %arg1[%c0, %c0_0] : memref<128x81xf32, #tpu.memory_space<vmem>>, vector<128x81xf32>
    %c0_1 = arith.constant 0 : index
    %c0_2 = arith.constant 0 : index
    %1 = vector.load %arg2[%c0_1, %c0_2] : memref<81x512xf32, #tpu.memory_space<vmem>>, vector<81x512xf32>
    %cst = arith.constant dense<0.000000e+00> : vector<128x512xf32>
    %2 = tpu.matmul %0, %1, %cst {dimension_numbers = #tpu.dot_dimension_numbers<[1], [0], [0], [1], [0, 0, 1, 1], [], []>} : vector<128x81xf32>, vector<81x512xf32>, vector<128x512xf32> -> vector<128x512xf32>
    %c0_3 = arith.constant 0 : index
    %c0_4 = arith.constant 0 : index
    %3 = vector.load %arg3[%c0_3, %c0_4] : memref<1x512xf32, #tpu.memory_space<vmem>>, vector<1x512xf32>
    %4 = vector.broadcast %3 : vector<1x512xf32> to vector<128x512xf32>
    %5 = arith.addf %2, %4 : vector<128x512xf32>
    %cst_5 = arith.constant 0.000000e+00 : f32
    %6 = vector.broadcast %cst_5 : f32 to vector<128x512xf32>
    %7 = arith.maximumf %5, %6 : vector<128x512xf32>
    %c0_6 = arith.constant 0 : index
    %c0_7 = arith.constant 0 : index
    %8 = vector.load %arg4[%c0_6, %c0_7] : memref<512x128xf32, #tpu.memory_space<vmem>>, vector<512x128xf32>
    %cst_8 = arith.constant dense<0.000000e+00> : vector<128x128xf32>
    %9 = tpu.matmul %7, %8, %cst_8 {dimension_numbers = #tpu.dot_dimension_numbers<[1], [0], [0], [1], [0, 0, 1, 1], [], []>} : vector<128x512xf32>, vector<512x128xf32>, vector<128x128xf32> -> vector<128x128xf32>
    %c0_9 = arith.constant 0 : index
    %c0_10 = arith.constant 0 : index
    %10 = vector.load %arg5[%c0_9, %c0_10] : memref<1x128xf32, #tpu.memory_space<vmem>>, vector<1x128xf32>
    %11 = vector.broadcast %10 : vector<1x128xf32> to vector<128x128xf32>
    %12 = arith.addf %9, %11 : vector<128x128xf32>
    %cst_11 = arith.constant 0.000000e+00 : f32
    %13 = vector.broadcast %cst_11 : f32 to vector<128x128xf32>
    %14 = arith.maximumf %12, %13 : vector<128x128xf32>
    %c0_12 = arith.constant 0 : index
    %c0_13 = arith.constant 0 : index
    %15 = vector.load %arg6[%c0_12, %c0_13] : memref<128x128xf32, #tpu.memory_space<vmem>>, vector<128x128xf32>
    tpu.vector_store %arg6[%c0_12, %c0_13], %14 {strides = array<i32>} : memref<128x128xf32, #tpu.memory_space<vmem>>, vector<128x128xf32>,
    return
  }
  func.func @transform_0(%arg0: i32) -> (i32, i32) {
    %c0_i32 = arith.constant 0 : i32
    %c0_i32_0 = arith.constant 0 : i32
    return %arg0, %c0_i32 : i32, i32
  }
  func.func @transform_1(%arg0: i32) -> (i32, i32) {
    %c0_i32 = arith.constant 0 : i32
    %c0_i32_0 = arith.constant 0 : i32
    %c0_i32_1 = arith.constant 0 : i32
    return %c0_i32, %c0_i32_0 : i32, i32
  }
  func.func @transform_2(%arg0: i32) -> (i32, i32) {
    %c0_i32 = arith.constant 0 : i32
    %c0_i32_0 = arith.constant 0 : i32
    %c0_i32_1 = arith.constant 0 : i32
    return %c0_i32, %c0_i32_0 : i32, i32
  }
  func.func @transform_3(%arg0: i32) -> (i32, i32) {
    %c0_i32 = arith.constant 0 : i32
    %c0_i32_0 = arith.constant 0 : i32
    %c0_i32_1 = arith.constant 0 : i32
    return %c0_i32, %c0_i32_0 : i32, i32
  }
  func.func @transform_4(%arg0: i32) -> (i32, i32) {
    %c0_i32 = arith.constant 0 : i32
    %c0_i32_0 = arith.constant 0 : i32
    %c0_i32_1 = arith.constant 0 : i32
    return %c0_i32, %c0_i32_0 : i32, i32
  }
  func.func @transform_5(%arg0: i32) -> (i32, i32) {
    %c0_i32 = arith.constant 0 : i32
    %c0_i32_0 = arith.constant 0 : i32
    return %arg0, %c0_i32 : i32, i32
  }
}

</mosaic_0001>

<llo_original>
// kernel: tile.8
$region0: #{tile.8}
  #allocation0 [shape = 's32[1]{0}', space=sflag, size = 0x4, scoped, tag = 'scoped memory for tile.8']
  %s0 = inlined_call_operand.vmem [shape: f32[20], index: 0, kind: input, shape index: {}]
  %s1 = inlined_call_operand.vmem [shape: f32[25,20], index: 1, kind: output, shape index: {}]
  // Predicated region
  $region2: #{tile.8} parent=0 // pred_check
    _
  $region3: #{tile.8} parent=0 // pred_check_branch
    %3 = sbr.rel (0) target = $region5
  $region4: #{tile.8} parent=0 // pred_region
    _
  $region5: #{tile.8} parent=0 // pred_fallthru
    _
  %v4 = vld [vmem:[%s0] ss:$0 sm:$0xff]
  %5 = vst [vmem:[%s1] sm:$0xff] %v4
  %s6 = scalar_lea.vmem %s1, 8
  %7 = vst [vmem:[%s6] sm:$0xff] %v4
  %s8 = scalar_lea.vmem %s1, 16
  %9 = vst [vmem:[%s8] sm:$0xff] %v4
  %s10 = scalar_lea.vmem %s1, 24
  %11 = vst [vmem:[%s10] sm:$0xff] %v4

// kernel: tile.9
$region0: #{tile.9}
  %s0 = inlined_call_operand.vmem [shape: f32[25,20], index: 0, kind: input, shape index: {}]
  %s1 = inlined_call_operand.vmem [shape: f32[1,500], index: 1, kind: output, shape index: {}]
  $region1: #{tile.9} parent=0
    #allocation0 [shape = 'u8[16384]{0}', space=vmem, size = 0x4000, scoped, tag = 'scoped mem for output reshape']
    %v2 = vld [vmem:[%s0] sm:$0x1]
    %vm3 = vcmask 162816
    %4 = vst.msk [vmem:[#allocation0] sm:$0x1] %vm3, %v2
    %s5 = scalar_lea.vmem %s0, 19
    %v6 = vld [vmem:[%s5] sm:$0x1]
    %s7 = scalar_lea.vmem %s0, 19
    %v8 = vld [vmem:[%s7] sm:$0x1]
    %vm9 = vcmask 31744
    %v10 = vsel %vm9, %v8, %v6
    %11 = vrot.lane.b32.xlu0 %v10, 124
    %v12 = vpop.permute.xlu0 %11
    %vm13 = vcmask 130048
    %s14 = scalar_lea.vmem [#allocation0], 24
    %15 = vst.msk [vmem:[%s14] sm:$0x1] %vm13, %v12
    %vm16 = vcmask 1048544
    %s17 = scalar_lea.vmem [#allocation0], 16
    %18 = vst.msk [vmem:[%s17] sm:$0x1] %vm16, %v12
    %s19 = scalar_lea.vmem %s0, 6
    %v20 = vld [vmem:[%s19] sm:$0x1]
    %s21 = scalar_lea.vmem %s0, 6
    %v22 = vld [vmem:[%s21] sm:$0x1]
    %vm23 = vcmask 64512
    %v24 = vsel %vm23, %v22, %v20
    %25 = vrot.lane.b32.xlu0 %v24, 120
    %v26 = vpop.permute.xlu0 %25
    %vm27 = vcmask 97280
    %s28 = scalar_lea.vmem [#allocation0], 8
    %29 = vst.msk [vmem:[%s28] sm:$0x1] %vm27, %v26
    %vm30 = vcmask 1048512
    %31 = vst.msk [vmem:[#allocation0] sm:$0x1] %vm30, %v26
    %s32 = scalar_lea.vmem %s0, 12
    %v33 = vld [vmem:[%s32] sm:$0x1]
    %s34 = scalar_lea.vmem %s0, 12
    %v35 = vld [vmem:[%s34] sm:$0x1]
    %vm36 = vcmask 130048
    %v37 = vsel %vm36, %v35, %v33
    %38 = vrot.lane.b32.xlu0 %v37, 112
    %v39 = vpop.permute.xlu0 %38
    %vm40 = vcmask 31744
    %s41 = scalar_lea.vmem [#allocation0], 16
    %42 = vst.msk [vmem:[%s41] sm:$0x1] %vm40, %v39
    %vm43 = vcmask 1048448
    %s44 = scalar_lea.vmem [#allocation0], 8
    %45 = vst.msk [vmem:[%s44] sm:$0x1] %vm43, %v39
    %s46 = scalar_lea.vmem %s0, 18
    %v47 = vld [vmem:[%s46] sm:$0x1]
    %48 = vrot.lane.b32.xlu0 %v47, 104
    %v49 = vpop.permute.xlu0 %48
    %vm50 = vcmask 1015616
    %s51 = scalar_lea.vmem [#allocation0], 16
    %52 = vst.msk [vmem:[%s51] sm:$0x1] %vm50, %v49
    %s53 = scalar_lea.vmem %s0, 5
    %v54 = vld [vmem:[%s53] sm:$0x1]
    %55 = vrot.lane.b32.xlu0 %v54, 100
    %v56 = vpop.permute.xlu0 %55
    %vm57 = vcmask 982816
    %58 = vst.msk [vmem:[#allocation0] sm:$0x1] %vm57, %v56
    %s59 = scalar_lea.vmem %s0, 24
    %v60 = vld [vmem:[%s59] sm:$0x1]
    %61 = vrot.lane.b32.xlu0 %v60, 96
    %v62 = vpop.permute.xlu0 %61
    %vm63 = vcmask 950016
    %s64 = scalar_lea.vmem [#allocation0], 24
    %65 = vst.msk [vmem:[%s64] sm:$0x1] %vm63, %v62
    %s66 = scalar_lea.vmem %s0, 11
    %v67 = vld [vmem:[%s66] sm:$0x1]
    %68 = vrot.lane.b32.xlu0 %v67, 92
    %v69 = vpop.permute.xlu0 %68
    %vm70 = vcmask 917216
    %s71 = scalar_lea.vmem [#allocation0], 8
    %72 = vst.msk [vmem:[%s71] sm:$0x1] %vm70, %v69
    %s73 = scalar_lea.vmem %s0, 17
    %v74 = vld [vmem:[%s73] sm:$0x1]
    %75 = vrot.lane.b32.xlu0 %v74, 84
    %v76 = vpop.permute.xlu0 %75
    %vm77 = vcmask 851616
    %s78 = scalar_lea.vmem [#allocation0], 16
    %79 = vst.msk [vmem:[%s78] sm:$0x1] %vm77, %v76
    %s80 = scalar_lea.vmem %s0, 4
    %v81 = vld [vmem:[%s80] sm:$0x1]
    %82 = vrot.lane.b32.xlu0 %v81, 80
    %v83 = vpop.permute.xlu0 %82
    %vm84 = vcmask 818816
    %85 = vst.msk [vmem:[#allocation0] sm:$0x1] %vm84, %v83
    %s86 = scalar_lea.vmem %s0, 23
    %v87 = vld [vmem:[%s86] sm:$0x1]
    %88 = vrot.lane.b32.xlu0 %v87, 76
    %v89 = vpop.permute.xlu0 %88
    %vm90 = vcmask 786016
    %s91 = scalar_lea.vmem [#allocation0], 24
    %92 = vst.msk [vmem:[%s91] sm:$0x1] %vm90, %v89
    %s93 = scalar_lea.vmem %s0, 10
    %v94 = vld [vmem:[%s93] sm:$0x1]
    %95 = vrot.lane.b32.xlu0 %v94, 72
    %v96 = vpop.permute.xlu0 %95
    %vm97 = vcmask 753216
    %s98 = scalar_lea.vmem [#allocation0], 8
    %99 = vst.msk [vmem:[%s98] sm:$0x1] %vm97, %v96
    %s100 = scalar_lea.vmem %s0, 16
    %v101 = vld [vmem:[%s100] sm:$0x1]
    %102 = vrot.lane.b32.xlu0 %v101, 64
    %v103 = vpop.permute.xlu0 %102
    %vm104 = vcmask 687616
    %s105 = scalar_lea.vmem [#allocation0], 16
    %106 = vst.msk [vmem:[%s105] sm:$0x1] %vm104, %v103
    %s107 = scalar_lea.vmem %s0, 3
    %v108 = vld [vmem:[%s107] sm:$0x1]
    %109 = vrot.lane.b32.xlu0 %v108, 60
    %v110 = vpop.permute.xlu0 %109
    %vm111 = vcmask 654816
    %112 = vst.msk [vmem:[#allocation0] sm:$0x1] %vm111, %v110
    %s113 = scalar_lea.vmem %s0, 22
    %v114 = vld [vmem:[%s113] sm:$0x1]
    %115 = vrot.lane.b32.xlu0 %v114, 56
    %v116 = vpop.permute.xlu0 %115
    %vm117 = vcmask 622016
    %s118 = scalar_lea.vmem [#allocation0], 24
    %119 = vst.msk [vmem:[%s118] sm:$0x1] %vm117, %v116
    %s120 = scalar_lea.vmem %s0, 9
    %v121 = vld [vmem:[%s120] sm:$0x1]
    %122 = vrot.lane.b32.xlu0 %v121, 52
    %v123 = vpop.permute.xlu0 %122
    %vm124 = vcmask 589216
    %s125 = scalar_lea.vmem [#allocation0], 8
    %126 = vst.msk [vmem:[%s125] sm:$0x1] %vm124, %v123
    %s127 = scalar_lea.vmem %s0, 15
    %v128 = vld [vmem:[%s127] sm:$0x1]
    %129 = vrot.lane.b32.xlu0 %v128, 44
    %v130 = vpop.permute.xlu0 %129
    %vm131 = vcmask 523616
    %s132 = scalar_lea.vmem [#allocation0], 16
    %133 = vst.msk [vmem:[%s132] sm:$0x1] %vm131, %v130
    %s134 = scalar_lea.vmem %s0, 2
    %v135 = vld [vmem:[%s134] sm:$0x1]
    %136 = vrot.lane.b32.xlu0 %v135, 40
    %v137 = vpop.permute.xlu0 %136
    %vm138 = vcmask 490816
    %139 = vst.msk [vmem:[#allocation0] sm:$0x1] %vm138, %v137
    %s140 = scalar_lea.vmem %s0, 21
    %v141 = vld [vmem:[%s140] sm:$0x1]
    %142 = vrot.lane.b32.xlu0 %v141, 36
    %v143 = vpop.permute.xlu0 %142
    %vm144 = vcmask 458016
    %s145 = scalar_lea.vmem [#allocation0], 24
    %146 = vst.msk [vmem:[%s145] sm:$0x1] %vm144, %v143
    %s147 = scalar_lea.vmem %s0, 8
    %v148 = vld [vmem:[%s147] sm:$0x1]
    %149 = vrot.lane.b32.xlu0 %v148, 32
    %v150 = vpop.permute.xlu0 %149
    %vm151 = vcmask 425216
    %s152 = scalar_lea.vmem [#allocation0], 8
    %153 = vst.msk [vmem:[%s152] sm:$0x1] %vm151, %v150
    %s154 = scalar_lea.vmem %s0, 14
    %v155 = vld [vmem:[%s154] sm:$0x1]
    %156 = vrot.lane.b32.xlu0 %v155, 24
    %v157 = vpop.permute.xlu0 %156
    %vm158 = vcmask 359616
    %s159 = scalar_lea.vmem [#allocation0], 16
    %160 = vst.msk [vmem:[%s159] sm:$0x1] %vm158, %v157
    %s161 = scalar_lea.vmem %s0, 1
    %v162 = vld [vmem:[%s161] sm:$0x1]
    %163 = vrot.lane.b32.xlu0 %v162, 20
    %v164 = vpop.permute.xlu0 %163
    %vm165 = vcmask 326816
    %166 = vst.msk [vmem:[#allocation0] sm:$0x1] %vm165, %v164
    %s167 = scalar_lea.vmem %s0, 20
    %v168 = vld [vmem:[%s167] sm:$0x1]
    %169 = vrot.lane.b32.xlu0 %v168, 16
    %v170 = vpop.permute.xlu0 %169
    %vm171 = vcmask 294016
    %s172 = scalar_lea.vmem [#allocation0], 24
    %173 = vst.msk [vmem:[%s172] sm:$0x1] %vm171, %v170
    %s174 = scalar_lea.vmem %s0, 7
    %v175 = vld [vmem:[%s174] sm:$0x1]
    %176 = vrot.lane.b32.xlu0 %v175, 12
    %v177 = vpop.permute.xlu0 %176
    %vm178 = vcmask 261216
    %s179 = scalar_lea.vmem [#allocation0], 8
    %180 = vst.msk [vmem:[%s179] sm:$0x1] %vm178, %v177
    %s181 = scalar_lea.vmem %s0, 13
    %v182 = vld [vmem:[%s181] sm:$0x1]
    %183 = vrot.lane.b32.xlu0 %v182, 4
    %v184 = vpop.permute.xlu0 %183
    %vm185 = vcmask 195616
    %s186 = scalar_lea.vmem [#allocation0], 16
    %187 = vst.msk [vmem:[%s186] sm:$0x1] %vm185, %v184
    %s189 = sshll.u32 1, 1
    %s190 = ssub.s32 %s189, 1
    %v192 = vld [vmem:[#allocation0] sm:%s190]
    %s193 = sshll.u32 1, 1
    %s194 = ssub.s32 %s193, 1
    %195 = vst [vmem:[%s1] sm:%s194] %v192
    %s196 = scalar_lea.vmem [#allocation0], 8
    %v197 = vld [vmem:[%s196] sm:%s190]
    %s198 = sshll.u32 1, 1
    %s199 = ssub.s32 %s198, 1
    %s200 = scalar_lea.vmem %s1, 1
    %201 = vst [vmem:[%s200] sm:%s199] %v197
    %s202 = scalar_lea.vmem [#allocation0], 16
    %v203 = vld [vmem:[%s202] sm:%s190]
    %s204 = sshll.u32 1, 1
    %s205 = ssub.s32 %s204, 1
    %s206 = smul.addr 1, 2
    %s207 = scalar_lea.vmem %s1, %s206
    %208 = vst [vmem:[%s207] sm:%s205] %v203
    %s209 = scalar_lea.vmem [#allocation0], 24
    %v210 = vld [vmem:[%s209] sm:%s190]
    %s211 = sshll.u32 1, 1
    %s212 = ssub.s32 %s211, 1
    %s213 = smul.addr 1, 3
    %s214 = scalar_lea.vmem %s1, %s213
    %215 = vst [vmem:[%s214] sm:%s212] %v210

// kernel: model_forward.1
$region0: #{model_forward.1}
  #allocation0 [shape = 'u32[]', space=smem, size = 0x4, offset = 0x4, fixed_abs, tag = 'smem constant byte address 0x4 - core index']
  #allocation1 [shape = 'u32[144,128]{1,0:T(1,128)}', space=vmem, size = 0x12000, scoped, tag = 'internal scratch']
  %s0 = inlined_call_operand.vmem [shape: f32[128,81], index: 0, kind: input, shape index: {}]
  %s1 = inlined_call_operand.vmem [shape: f32[81,512], index: 1, kind: input, shape index: {}]
  %s2 = inlined_call_operand.vmem [shape: f32[1,512], index: 2, kind: input, shape index: {}]
  %s3 = inlined_call_operand.vmem [shape: f32[512,128], index: 3, kind: input, shape index: {}]
  %s4 = inlined_call_operand.vmem [shape: f32[1,128], index: 4, kind: input, shape index: {}]
  %s5 = inlined_call_operand.hbm [shape: f32[128,128], index: 5, kind: output, shape index: {}]
  %s6 = sld [smem:[#allocation0]]
  $region30: #{model_forward.1} parent=0
    _
  %s8 = ssub.s32 1, %s6
  %s9 = scalar_select 0, %s8, %s6
  $region1: #{model_forward.1} parent=0
    #allocation2 [shape = 'u8[65536]{0}', space=vmem, size = 0x10000, scoped, tag = 'output window, operand 0, single buffered']
    #allocation3 [shape = 's32[1]{0}', space=sflag, size = 0x4, scoped, tag = 'scoped memory for model_forward.1']
    %10 = vsyncpa [#allocation3], 0
    // Predicated region
    $region2: #{model_forward.1} parent=1 // pred_check
      _
    $region3: #{model_forward.1} parent=1 // pred_check_branch
      %12 = sbr.rel (0) target = $region5
    $region4: #{model_forward.1} parent=1 // pred_region
      _
    $region5: #{model_forward.1} parent=1 // pred_fallthru
      _
    // Predicated region
    $region6: #{model_forward.1} parent=1 // pred_check
      _
    $region7: #{model_forward.1} parent=1 // pred_check_branch
      %14 = sbr.rel (0) target = $region9
    $region8: #{model_forward.1} parent=1 // pred_region
      _
    $region9: #{model_forward.1} parent=1 // pred_fallthru
      _
    // Predicated region
    $region10: #{model_forward.1} parent=1 // pred_check
      _
    $region11: #{model_forward.1} parent=1 // pred_check_branch
      %16 = sbr.rel (0) target = $region13
    $region12: #{model_forward.1} parent=1 // pred_region
      _
    $region13: #{model_forward.1} parent=1 // pred_fallthru
      _
    // Predicated region
    $region14: #{model_forward.1} parent=1 // pred_check
      _
    $region15: #{model_forward.1} parent=1 // pred_check_branch
      %18 = sbr.rel (0) target = $region17
    $region16: #{model_forward.1} parent=1 // pred_region
      _
    $region17: #{model_forward.1} parent=1 // pred_fallthru
      _
    // Predicated region
    $region18: #{model_forward.1} parent=1 // pred_check
      _
    $region19: #{model_forward.1} parent=1 // pred_check_branch
      %20 = sbr.rel (0) target = $region21
    $region20: #{model_forward.1} parent=1 // pred_region
      _
    $region21: #{model_forward.1} parent=1 // pred_fallthru
      _
    %v21 = vld [vmem:[%s0] sm:$0xff]
    %v22 = vld [vmem:[%s0 + $0x8] sm:$0xff]
    %v23 = vld [vmem:[%s0 + $0x10] sm:$0xff]
    %v24 = vld [vmem:[%s0 + $0x18] sm:$0xff]
    %v25 = vld [vmem:[%s0 + $0x20] sm:$0xff]
    %v26 = vld [vmem:[%s0 + $0x28] sm:$0xff]
    %v27 = vld [vmem:[%s0 + $0x30] sm:$0xff]
    %v28 = vld [vmem:[%s0 + $0x38] sm:$0xff]
    %v29 = vld [vmem:[%s0 + $0x40] sm:$0xff]
    %v30 = vld [vmem:[%s0 + $0x48] sm:$0xff]
    %v31 = vld [vmem:[%s0 + $0x50] sm:$0xff]
    %v32 = vld [vmem:[%s0 + $0x58] sm:$0xff]
    %v33 = vld [vmem:[%s0 + $0x60] sm:$0xff]
    %v34 = vld [vmem:[%s0 + $0x68] sm:$0xff]
    %v35 = vld [vmem:[%s0 + $0x70] sm:$0xff]
    %v36 = vld [vmem:[%s0 + $0x78] sm:$0xff]
    %v37 = vld [vmem:[%s1] sm:$0xff]
    %v38 = vld [vmem:[%s1 + $0x8] sm:$0xff]
    %v39 = vld [vmem:[%s1 + $0x10] sm:$0xff]
    %v40 = vld [vmem:[%s1 + $0x18] sm:$0xff]
    %v41 = vld [vmem:[%s1 + $0x20] sm:$0xff]
    %v42 = vld [vmem:[%s1 + $0x28] sm:$0xff]
    %v43 = vld [vmem:[%s1 + $0x30] sm:$0xff]
    %v44 = vld [vmem:[%s1 + $0x38] sm:$0xff]
    %v45 = vld [vmem:[%s1 + $0x40] sm:$0xff]
    %v46 = vld [vmem:[%s1 + $0x48] sm:$0xff]
    %v47 = vld [vmem:[%s1 + $0x50] sm:$0xff]
    %v48 = vld [vmem:[%s1 + $0x58] sm:$0xff]
    %v49 = vld [vmem:[%s1 + $0x60] sm:$0xff]
    %v50 = vld [vmem:[%s1 + $0x68] sm:$0xff]
    %v51 = vld [vmem:[%s1 + $0x70] sm:$0xff]
    %v52 = vld [vmem:[%s1 + $0x78] sm:$0xff]
    %v53 = vld [vmem:[%s1 + $0x80] sm:$0xff]
    %v54 = vld [vmem:[%s1 + $0x88] sm:$0xff]
    %v55 = vld [vmem:[%s1 + $0x90] sm:$0xff]
    %v56 = vld [vmem:[%s1 + $0x98] sm:$0xff]
    %v57 = vld [vmem:[%s1 + $0xa0] sm:$0xff]
    %v58 = vld [vmem:[%s1 + $0xa8] sm:$0xff]
    %v59 = vld [vmem:[%s1 + $0xb0] sm:$0xff]
    %v60 = vld [vmem:[%s1 + $0xb8] sm:$0xff]
    %v61 = vld [vmem:[%s1 + $0xc0] sm:$0xff]
    %v62 = vld [vmem:[%s1 + $0xc8] sm:$0xff]
    %v63 = vld [vmem:[%s1 + $0xd0] sm:$0xff]
    %v64 = vld [vmem:[%s1 + $0xd8] sm:$0xff]
    %v65 = vld [vmem:[%s1 + $0xe0] sm:$0xff]
    %v66 = vld [vmem:[%s1 + $0xe8] sm:$0xff]
    %v67 = vld [vmem:[%s1 + $0xf0] sm:$0xff]
    %v68 = vld [vmem:[%s1 + $0xf8] sm:$0xff]
    %v69 = vld [vmem:[%s1 + $0x100] sm:$0xff]
    %v70 = vld [vmem:[%s1 + $0x108] sm:$0xff]
    %v71 = vld [vmem:[%s1 + $0x110] sm:$0xff]
    %v72 = vld [vmem:[%s1 + $0x118] sm:$0xff]
    %v73 = vld [vmem:[%s1 + $0x120] sm:$0xff]
    %v74 = vld [vmem:[%s1 + $0x128] sm:$0xff]
    %v75 = vld [vmem:[%s1 + $0x130] sm:$0xff]
    %v76 = vld [vmem:[%s1 + $0x138] sm:$0xff]
    %v77 = vld [vmem:[%s1 + $0x140] sm:$0x1]
    %v78 = vld [vmem:[%s1 + $0x148] sm:$0x1]
    %v79 = vld [vmem:[%s1 + $0x150] sm:$0x1]
    %v80 = vld [vmem:[%s1 + $0x158] sm:$0x1]
    %v81 = vld [vmem:[%s2] sm:$0xf]
    %v83 = vlaneseq
    %v84 = vshrl.u32 %v83, 7
    %v85 = vsub.s32 0, %v84
    %v86 = vrot.slane %v81, %v85
    %v87 = vlaneseq
    %v88 = vshrl.u32 %v87, 7
    %v89 = vsub.s32 1, %v88
    %v90 = vrot.slane %v81, %v89
    %v91 = vlaneseq
    %v92 = vshrl.u32 %v91, 7
    %v93 = vsub.s32 2, %v92
    %v94 = vrot.slane %v81, %v93
    %v95 = vlaneseq
    %v96 = vshrl.u32 %v95, 7
    %v97 = vsub.s32 3, %v96
    %v98 = vrot.slane %v81, %v97
    %vm103 = vcmask 662528
    %v105 = vsel %vm103, %v21, 0
    %v108 = vsel %vm103, %v22, 0
    %v111 = vsel %vm103, %v23, 0
    %v114 = vsel %vm103, %v24, 0
    %v117 = vsel %vm103, %v25, 0
    %v120 = vsel %vm103, %v26, 0
    %v123 = vsel %vm103, %v27, 0
    %v126 = vsel %vm103, %v28, 0
    %v129 = vsel %vm103, %v29, 0
    %v132 = vsel %vm103, %v30, 0
    %v135 = vsel %vm103, %v31, 0
    %v138 = vsel %vm103, %v32, 0
    %v141 = vsel %vm103, %v33, 0
    %v144 = vsel %vm103, %v34, 0
    %v147 = vsel %vm103, %v35, 0
    %v150 = vsel %vm103, %v36, 0
    %vm152 = vcmask 1040384
    %v154 = vsel %vm152, %v77, 0
    %v157 = vsel %vm152, %v78, 0
    %v160 = vsel %vm152, %v79, 0
    %v163 = vsel %vm152, %v80, 0
    %165 = vmatprep.subr.mxu0 0.0
    %166 = vmatpush1.msra.mxu0 0.0
    %167 = vmatprep.subr.mxu0 0.0
    %168 = vmatpush1.msra.mxu0 0.0
    %169 = vmatprep.subr.mxu0 0.0
    %170 = vmatpush1.msra.mxu0 0.0
    %171 = vmatprep.subr.mxu0 0.0
    %172 = vmatpush1.msra.mxu0 0.0
    %173 = vmatprep.subr.mxu0 0.0
    %174 = vmatpush1.msra.mxu0 0.0
    %175 = vmatprep.subr.mxu0 %v157
    %176 = vmatpush1.msra.mxu0 %v154
    %177 = vmatprep.subr.mxu0 %v74
    %178 = vmatpush1.msra.mxu0 %v73
    %179 = vmatprep.subr.mxu0 %v70
    %180 = vmatpush1.msra.mxu0 %v69
    %181 = vmatprep.subr.mxu0 %v66
    %182 = vmatpush1.msra.mxu0 %v65
    %183 = vmatprep.subr.mxu0 %v62
    %184 = vmatpush1.msra.mxu0 %v61
    %185 = vmatprep.subr.mxu0 %v58
    %186 = vmatpush1.msra.mxu0 %v57
    %187 = vmatprep.subr.mxu0 %v54
    %188 = vmatpush1.msra.mxu0 %v53
    %189 = vmatprep.subr.mxu0 %v50
    %190 = vmatpush1.msra.mxu0 %v49
    %191 = vmatprep.subr.mxu0 %v46
    %192 = vmatpush1.msra.mxu0 %v45
    %193 = vmatprep.subr.mxu0 %v42
    %194 = vmatpush1.msra.mxu0 %v41
    %195 = vmatprep.subr.mxu0 %v38
    %196 = vmatpush1.msra.mxu0 %v37
    %197 = vmatprep.subr.mxu0 0.0
    %198 = vmatpush2.msra.mxu0 0.0
    %199 = vmatprep.subr.mxu0 0.0
    %200 = vmatpush2.msra.mxu0 0.0
    %201 = vmatprep.subr.mxu0 0.0
    %202 = vmatpush2.msra.mxu0 0.0
    %203 = vmatprep.subr.mxu0 0.0
    %204 = vmatpush2.msra.mxu0 0.0
    %205 = vmatprep.subr.mxu0 0.0
    %206 = vmatpush2.msra.mxu0 0.0
    %207 = vmatprep.subr.mxu0 0.0
    %208 = vmatpush2.msra.mxu0 0.0
    %209 = vmatprep.subr.mxu0 0.0
    %210 = vmatpush2.msra.mxu0 0.0
    %211 = vmatprep.subr.mxu0 0.0
    %212 = vmatpush2.msra.mxu0 0.0
    %213 = vmatprep.subr.mxu0 0.0
    %214 = vmatpush2.msra.mxu0 0.0
    %215 = vmatprep.subr.mxu0 0.0
    %216 = vmatpush2.msra.mxu0 0.0
    %217 = vmatprep.subr.mxu0 0.0
    %218 = vmatpush2.msra.mxu0 0.0
    %219 = vmatprep.subr.mxu0 0.0
    %220 = vmatpush2.msra.mxu0 0.0
    %221 = vmatprep.subr.mxu0 0.0
    %222 = vmatpush2.msra.mxu0 0.0
    %223 = vmatprep.subr.mxu0 0.0
    %224 = vmatpush2.msra.mxu0 0.0
    %225 = vmatprep.subr.mxu0 0.0
    %226 = vmatpush2.msra.mxu0 0.0
    %227 = vmatprep.subr.mxu0 0.0
    %228 = vmatpush2.msra.mxu0 0.0
    %229 = vmatprep.mubr.f32.mxu0 0.0
    %230 = vmatmul.mubr.f32.gmra.mxu0 %v105
    %v231 = vpop.f32.mrf.mxu0
    %v232 = vadd.f32 %v86, %v231
    %v233 = vpop.f32.mrf.mxu0
    %v234 = vadd.f32 %v90, %v233
    %235 = vmatprep.mubr.f32.mxu0 0.0
    %236 = vmatmul.mubr.f32.gmra.mxu0 %v108
    %v237 = vpop.f32.mrf.mxu0
    %v238 = vadd.f32 %v86, %v237
    %v239 = vpop.f32.mrf.mxu0
    %v240 = vadd.f32 %v90, %v239
    %241 = vmatprep.mubr.f32.mxu0 0.0
    %242 = vmatmul.mubr.f32.gmra.mxu0 %v111
    %v243 = vpop.f32.mrf.mxu0
    %v244 = vadd.f32 %v86, %v243
    %v245 = vpop.f32.mrf.mxu0
    %v246 = vadd.f32 %v90, %v245
    %247 = vmatprep.mubr.f32.mxu0 0.0
    %248 = vmatmul.mubr.f32.gmra.mxu0 %v114
    %v249 = vpop.f32.mrf.mxu0
    %v250 = vadd.f32 %v86, %v249
    %v251 = vpop.f32.mrf.mxu0
    %v252 = vadd.f32 %v90, %v251
    %253 = vmatprep.mubr.f32.mxu0 0.0
    %254 = vmatmul.mubr.f32.gmra.mxu0 %v117
    %v255 = vpop.f32.mrf.mxu0
    %v256 = vadd.f32 %v86, %v255
    %v257 = vpop.f32.mrf.mxu0
    %v258 = vadd.f32 %v90, %v257
    %259 = vmatprep.mubr.f32.mxu0 0.0
    %260 = vmatmul.mubr.f32.gmra.mxu0 %v120
    %v261 = vpop.f32.mrf.mxu0
    %v262 = vadd.f32 %v86, %v261
    %v263 = vpop.f32.mrf.mxu0
    %v264 = vadd.f32 %v90, %v263
    %265 = vmatprep.mubr.f32.mxu0 0.0
    %266 = vmatmul.mubr.f32.gmra.mxu0 %v123
    %v267 = vpop.f32.mrf.mxu0
    %v268 = vadd.f32 %v86, %v267
    %v269 = vpop.f32.mrf.mxu0
    %v270 = vadd.f32 %v90, %v269
    %271 = vmatprep.mubr.f32.mxu0 0.0
    %272 = vmatmul.mubr.f32.gmra.mxu0 %v126
    %v273 = vpop.f32.mrf.mxu0
    %v274 = vadd.f32 %v86, %v273
    %v275 = vpop.f32.mrf.mxu0
    %v276 = vadd.f32 %v90, %v275
    %277 = vmatprep.mubr.f32.mxu0 0.0
    %278 = vmatmul.mubr.f32.gmra.mxu0 %v129
    %v279 = vpop.f32.mrf.mxu0
    %v280 = vadd.f32 %v86, %v279
    %v281 = vpop.f32.mrf.mxu0
    %v282 = vadd.f32 %v90, %v281
    %283 = vmatprep.mubr.f32.mxu0 0.0
    %284 = vmatmul.mubr.f32.gmra.mxu0 %v132
    %v285 = vpop.f32.mrf.mxu0
    %v286 = vadd.f32 %v86, %v285
    %v287 = vpop.f32.mrf.mxu0
    %v288 = vadd.f32 %v90, %v287
    %289 = vmatprep.mubr.f32.mxu0 0.0
    %290 = vmatmul.mubr.f32.gmra.mxu0 %v135
    %v291 = vpop.f32.mrf.mxu0
    %v292 = vadd.f32 %v86, %v291
    %v293 = vpop.f32.mrf.mxu0
    %v294 = vadd.f32 %v90, %v293
    %295 = vmatprep.mubr.f32.mxu0 0.0
    %296 = vmatmul.mubr.f32.gmra.mxu0 %v138
    %v297 = vpop.f32.mrf.mxu0
    %v298 = vadd.f32 %v86, %v297
    %v299 = vpop.f32.mrf.mxu0
    %v300 = vadd.f32 %v90, %v299
    %301 = vmatprep.mubr.f32.mxu0 0.0
    %302 = vmatmul.mubr.f32.gmra.mxu0 %v141
    %v303 = vpop.f32.mrf.mxu0
    %v304 = vadd.f32 %v86, %v303
    %v305 = vpop.f32.mrf.mxu0
    %v306 = vadd.f32 %v90, %v305
    %307 = vmatprep.mubr.f32.mxu0 0.0
    %308 = vmatmul.mubr.f32.gmra.mxu0 %v144
    %v309 = vpop.f32.mrf.mxu0
    %v310 = vadd.f32 %v86, %v309
    %v311 = vpop.f32.mrf.mxu0
    %v312 = vadd.f32 %v90, %v311
    %313 = vmatprep.mubr.f32.mxu0 0.0
    %314 = vmatmul.mubr.f32.gmra.mxu0 %v147
    %v315 = vpop.f32.mrf.mxu0
    %v316 = vadd.f32 %v86, %v315
    %v317 = vpop.f32.mrf.mxu0
    %v318 = vadd.f32 %v90, %v317
    %319 = vmatprep.mubr.f32.mxu0 0.0
    %320 = vmatmul.mubr.f32.gmra.mxu0 %v150
    %v321 = vpop.f32.mrf.mxu0
    %v322 = vadd.f32 %v86, %v321
    %v323 = vpop.f32.mrf.mxu0
    %v324 = vadd.f32 %v90, %v323
    %325 = vdwg.mxu0
    %326 = vmatprep.subr.mxu0 0.0
    %327 = vmatpush1.msra.mxu0 0.0
    %328 = vmatprep.subr.mxu0 0.0
    %329 = vmatpush1.msra.mxu0 0.0
    %330 = vmatprep.subr.mxu0 0.0
    %331 = vmatpush1.msra.mxu0 0.0
    %332 = vmatprep.subr.mxu0 0.0
    %333 = vmatpush1.msra.mxu0 0.0
    %334 = vmatprep.subr.mxu0 0.0
    %335 = vmatpush1.msra.mxu0 0.0
    %336 = vmatprep.subr.mxu0 %v163
    %337 = vmatpush1.msra.mxu0 %v160
    %338 = vmatprep.subr.mxu0 %v76
    %339 = vmatpush1.msra.mxu0 %v75
    %340 = vmatprep.subr.mxu0 %v72
    %341 = vmatpush1.msra.mxu0 %v71
    %342 = vmatprep.subr.mxu0 %v68
    %343 = vmatpush1.msra.mxu0 %v67
    %344 = vmatprep.subr.mxu0 %v64
    %345 = vmatpush1.msra.mxu0 %v63
    %346 = vmatprep.subr.mxu0 %v60
    %347 = vmatpush1.msra.mxu0 %v59
    %348 = vmatprep.subr.mxu0 %v56
    %349 = vmatpush1.msra.mxu0 %v55
    %350 = vmatprep.subr.mxu0 %v52
    %351 = vmatpush1.msra.mxu0 %v51
    %352 = vmatprep.subr.mxu0 %v48
    %353 = vmatpush1.msra.mxu0 %v47
    %354 = vmatprep.subr.mxu0 %v44
    %355 = vmatpush1.msra.mxu0 %v43
    %356 = vmatprep.subr.mxu0 %v40
    %357 = vmatpush1.msra.mxu0 %v39
    %358 = vmatprep.subr.mxu0 0.0
    %359 = vmatpush2.msra.mxu0 0.0
    %360 = vmatprep.subr.mxu0 0.0
    %361 = vmatpush2.msra.mxu0 0.0
    %362 = vmatprep.subr.mxu0 0.0
    %363 = vmatpush2.msra.mxu0 0.0
    %364 = vmatprep.subr.mxu0 0.0
    %365 = vmatpush2.msra.mxu0 0.0
    %366 = vmatprep.subr.mxu0 0.0
    %367 = vmatpush2.msra.mxu0 0.0
    %368 = vmatprep.subr.mxu0 0.0
    %369 = vmatpush2.msra.mxu0 0.0
    %370 = vmatprep.subr.mxu0 0.0
    %371 = vmatpush2.msra.mxu0 0.0
    %372 = vmatprep.subr.mxu0 0.0
    %373 = vmatpush2.msra.mxu0 0.0
    %374 = vmatprep.subr.mxu0 0.0
    %375 = vmatpush2.msra.mxu0 0.0
    %376 = vmatprep.subr.mxu0 0.0
    %377 = vmatpush2.msra.mxu0 0.0
    %378 = vmatprep.subr.mxu0 0.0
    %379 = vmatpush2.msra.mxu0 0.0
    %380 = vmatprep.subr.mxu0 0.0
    %381 = vmatpush2.msra.mxu0 0.0
    %382 = vmatprep.subr.mxu0 0.0
    %383 = vmatpush2.msra.mxu0 0.0
    %384 = vmatprep.subr.mxu0 0.0
    %385 = vmatpush2.msra.mxu0 0.0
    %386 = vmatprep.subr.mxu0 0.0
    %387 = vmatpush2.msra.mxu0 0.0
    %388 = vmatprep.subr.mxu0 0.0
    %389 = vmatpush2.msra.mxu0 0.0
    %390 = vmatprep.mubr.f32.mxu0 0.0
    %391 = vmatmul.mubr.f32.gmra.mxu0 %v105
    %v392 = vpop.f32.mrf.mxu0
    %v393 = vadd.f32 %v94, %v392
    %v394 = vpop.f32.mrf.mxu0
    %v395 = vadd.f32 %v98, %v394
    %396 = vmatprep.mubr.f32.mxu0 0.0
    %397 = vmatmul.mubr.f32.gmra.mxu0 %v108
    %v398 = vpop.f32.mrf.mxu0
    %v399 = vadd.f32 %v94, %v398
    %v400 = vpop.f32.mrf.mxu0
    %v401 = vadd.f32 %v98, %v400
    %402 = vmatprep.mubr.f32.mxu0 0.0
    %403 = vmatmul.mubr.f32.gmra.mxu0 %v111
    %v404 = vpop.f32.mrf.mxu0
    %v405 = vadd.f32 %v94, %v404
    %v406 = vpop.f32.mrf.mxu0
    %v407 = vadd.f32 %v98, %v406
    %408 = vmatprep.mubr.f32.mxu0 0.0
    %409 = vmatmul.mubr.f32.gmra.mxu0 %v114
    %v410 = vpop.f32.mrf.mxu0
    %v411 = vadd.f32 %v94, %v410
    %v412 = vpop.f32.mrf.mxu0
    %v413 = vadd.f32 %v98, %v412
    %414 = vmatprep.mubr.f32.mxu0 0.0
    %415 = vmatmul.mubr.f32.gmra.mxu0 %v117
    %v416 = vpop.f32.mrf.mxu0
    %v417 = vadd.f32 %v94, %v416
    %v418 = vpop.f32.mrf.mxu0
    %v419 = vadd.f32 %v98, %v418
    %420 = vmatprep.mubr.f32.mxu0 0.0
    %421 = vmatmul.mubr.f32.gmra.mxu0 %v120
    %v422 = vpop.f32.mrf.mxu0
    %v423 = vadd.f32 %v94, %v422
    %v424 = vpop.f32.mrf.mxu0
    %v425 = vadd.f32 %v98, %v424
    %426 = vmatprep.mubr.f32.mxu0 0.0
    %427 = vmatmul.mubr.f32.gmra.mxu0 %v123
    %v428 = vpop.f32.mrf.mxu0
    %v429 = vadd.f32 %v94, %v428
    %v430 = vpop.f32.mrf.mxu0
    %v431 = vadd.f32 %v98, %v430
    %432 = vmatprep.mubr.f32.mxu0 0.0
    %433 = vmatmul.mubr.f32.gmra.mxu0 %v126
    %v434 = vpop.f32.mrf.mxu0
    %v435 = vadd.f32 %v94, %v434
    %v436 = vpop.f32.mrf.mxu0
    %v437 = vadd.f32 %v98, %v436
    %438 = vmatprep.mubr.f32.mxu0 0.0
    %439 = vmatmul.mubr.f32.gmra.mxu0 %v129
    %v440 = vpop.f32.mrf.mxu0
    %v441 = vadd.f32 %v94, %v440
    %v442 = vpop.f32.mrf.mxu0
    %v443 = vadd.f32 %v98, %v442
    %444 = vmatprep.mubr.f32.mxu0 0.0
    %445 = vmatmul.mubr.f32.gmra.mxu0 %v132
    %v446 = vpop.f32.mrf.mxu0
    %v447 = vadd.f32 %v94, %v446
    %v448 = vpop.f32.mrf.mxu0
    %v449 = vadd.f32 %v98, %v448
    %450 = vmatprep.mubr.f32.mxu0 0.0
    %451 = vmatmul.mubr.f32.gmra.mxu0 %v135
    %v452 = vpop.f32.mrf.mxu0
    %v453 = vadd.f32 %v94, %v452
    %v454 = vpop.f32.mrf.mxu0
    %v455 = vadd.f32 %v98, %v454
    %456 = vmatprep.mubr.f32.mxu0 0.0
    %457 = vmatmul.mubr.f32.gmra.mxu0 %v138
    %v458 = vpop.f32.mrf.mxu0
    %v459 = vadd.f32 %v94, %v458
    %v460 = vpop.f32.mrf.mxu0
    %v461 = vadd.f32 %v98, %v460
    %462 = vmatprep.mubr.f32.mxu0 0.0
    %463 = vmatmul.mubr.f32.gmra.mxu0 %v141
    %v464 = vpop.f32.mrf.mxu0
    %v465 = vadd.f32 %v94, %v464
    %v466 = vpop.f32.mrf.mxu0
    %v467 = vadd.f32 %v98, %v466
    %468 = vmatprep.mubr.f32.mxu0 0.0
    %469 = vmatmul.mubr.f32.gmra.mxu0 %v144
    %v470 = vpop.f32.mrf.mxu0
    %v471 = vadd.f32 %v94, %v470
    %v472 = vpop.f32.mrf.mxu0
    %v473 = vadd.f32 %v98, %v472
    %474 = vmatprep.mubr.f32.mxu0 0.0
    %475 = vmatmul.mubr.f32.gmra.mxu0 %v147
    %v476 = vpop.f32.mrf.mxu0
    %v477 = vadd.f32 %v94, %v476
    %v478 = vpop.f32.mrf.mxu0
    %v479 = vadd.f32 %v98, %v478
    %480 = vmatprep.mubr.f32.mxu0 0.0
    %481 = vmatmul.mubr.f32.gmra.mxu0 %v150
    %v482 = vpop.f32.mrf.mxu0
    %v483 = vadd.f32 %v94, %v482
    %v484 = vpop.f32.mrf.mxu0
    %v485 = vadd.f32 %v98, %v484
    %486 = vdwg.mxu0
    %v487 = vmax.f32 %v232, 0.0
    %v488 = vmax.f32 %v234, 0.0
    %v489 = vmax.f32 %v393, 0.0
    %v490 = vmax.f32 %v395, 0.0
    %v491 = vmax.f32 %v238, 0.0
    %v492 = vmax.f32 %v240, 0.0
    %v493 = vmax.f32 %v399, 0.0
    %v494 = vmax.f32 %v401, 0.0
    %v495 = vmax.f32 %v244, 0.0
    %v496 = vmax.f32 %v246, 0.0
    %v497 = vmax.f32 %v405, 0.0
    %v498 = vmax.f32 %v407, 0.0
    %v499 = vmax.f32 %v250, 0.0
    %v500 = vmax.f32 %v252, 0.0
    %v501 = vmax.f32 %v411, 0.0
    %v502 = vmax.f32 %v413, 0.0
    %v503 = vmax.f32 %v256, 0.0
    %v504 = vmax.f32 %v258, 0.0
    %v505 = vmax.f32 %v417, 0.0
    %v506 = vmax.f32 %v419, 0.0
    %v507 = vmax.f32 %v262, 0.0
    %v508 = vmax.f32 %v264, 0.0
    %v509 = vmax.f32 %v423, 0.0
    %v510 = vmax.f32 %v425, 0.0
    %v511 = vmax.f32 %v268, 0.0
    %v512 = vmax.f32 %v270, 0.0
    %v513 = vmax.f32 %v429, 0.0
    %v514 = vmax.f32 %v431, 0.0
    %v515 = vmax.f32 %v274, 0.0
    %v516 = vmax.f32 %v276, 0.0
    %v517 = vmax.f32 %v435, 0.0
    %v518 = vmax.f32 %v437, 0.0
    %v519 = vmax.f32 %v280, 0.0
    %v520 = vmax.f32 %v282, 0.0
    %v521 = vmax.f32 %v441, 0.0
    %v522 = vmax.f32 %v443, 0.0
    %v523 = vmax.f32 %v286, 0.0
    %v524 = vmax.f32 %v288, 0.0
    %v525 = vmax.f32 %v447, 0.0
    %v526 = vmax.f32 %v449, 0.0
    %v527 = vmax.f32 %v292, 0.0
    %v528 = vmax.f32 %v294, 0.0
    %v529 = vmax.f32 %v453, 0.0
    %v530 = vmax.f32 %v455, 0.0
    %v531 = vmax.f32 %v298, 0.0
    %v532 = vmax.f32 %v300, 0.0
    %v533 = vmax.f32 %v459, 0.0
    %v534 = vmax.f32 %v461, 0.0
    %v535 = vmax.f32 %v304, 0.0
    %v536 = vmax.f32 %v306, 0.0
    %v537 = vmax.f32 %v465, 0.0
    %v538 = vmax.f32 %v467, 0.0
    %v539 = vmax.f32 %v310, 0.0
    %v540 = vmax.f32 %v312, 0.0
    %v541 = vmax.f32 %v471, 0.0
    %v542 = vmax.f32 %v473, 0.0
    %v543 = vmax.f32 %v316, 0.0
    %v544 = vmax.f32 %v318, 0.0
    %v545 = vmax.f32 %v477, 0.0
    %v546 = vmax.f32 %v479, 0.0
    %v547 = vmax.f32 %v322, 0.0
    %v548 = vmax.f32 %v324, 0.0
    %v549 = vmax.f32 %v483, 0.0
    %v550 = vmax.f32 %v485, 0.0
    %v551 = vld [vmem:[%s3] sm:$0xff]
    %v552 = vld [vmem:[%s3 + $0x8] sm:$0xff]
    %v553 = vld [vmem:[%s3 + $0x10] sm:$0xff]
    %v554 = vld [vmem:[%s3 + $0x18] sm:$0xff]
    %v555 = vld [vmem:[%s3 + $0x20] sm:$0xff]
    %v556 = vld [vmem:[%s3 + $0x28] sm:$0xff]
    %v557 = vld [vmem:[%s3 + $0x30] sm:$0xff]
    %v558 = vld [vmem:[%s3 + $0x38] sm:$0xff]
    %v559 = vld [vmem:[%s3 + $0x40] sm:$0xff]
    %v560 = vld [vmem:[%s3 + $0x48] sm:$0xff]
    %v561 = vld [vmem:[%s3 + $0x50] sm:$0xff]
    %v562 = vld [vmem:[%s3 + $0x58] sm:$0xff]
    %v563 = vld [vmem:[%s3 + $0x60] sm:$0xff]
    %v564 = vld [vmem:[%s3 + $0x68] sm:$0xff]
    %v565 = vld [vmem:[%s3 + $0x70] sm:$0xff]
    %v566 = vld [vmem:[%s3 + $0x78] sm:$0xff]
    %v567 = vld [vmem:[%s3 + $0x80] sm:$0xff]
    %v568 = vld [vmem:[%s3 + $0x88] sm:$0xff]
    %v569 = vld [vmem:[%s3 + $0x90] sm:$0xff]
    %v570 = vld [vmem:[%s3 + $0x98] sm:$0xff]
    %v571 = vld [vmem:[%s3 + $0xa0] sm:$0xff]
    %v572 = vld [vmem:[%s3 + $0xa8] sm:$0xff]
    %v573 = vld [vmem:[%s3 + $0xb0] sm:$0xff]
    %v574 = vld [vmem:[%s3 + $0xb8] sm:$0xff]
    %v575 = vld [vmem:[%s3 + $0xc0] sm:$0xff]
    %v576 = vld [vmem:[%s3 + $0xc8] sm:$0xff]
    %v577 = vld [vmem:[%s3 + $0xd0] sm:$0xff]
    %v578 = vld [vmem:[%s3 + $0xd8] sm:$0xff]
    %v579 = vld [vmem:[%s3 + $0xe0] sm:$0xff]
    %v580 = vld [vmem:[%s3 + $0xe8] sm:$0xff]
    %v581 = vld [vmem:[%s3 + $0xf0] sm:$0xff]
    %v582 = vld [vmem:[%s3 + $0xf8] sm:$0xff]
    %v583 = vld [vmem:[%s3 + $0x100] sm:$0xff]
    %v584 = vld [vmem:[%s3 + $0x108] sm:$0xff]
    %v585 = vld [vmem:[%s3 + $0x110] sm:$0xff]
    %v586 = vld [vmem:[%s3 + $0x118] sm:$0xff]
    %v587 = vld [vmem:[%s3 + $0x120] sm:$0xff]
    %v588 = vld [vmem:[%s3 + $0x128] sm:$0xff]
    %v589 = vld [vmem:[%s3 + $0x130] sm:$0xff]
    %v590 = vld [vmem:[%s3 + $0x138] sm:$0xff]
    %v591 = vld [vmem:[%s3 + $0x140] sm:$0xff]
    %v592 = vld [vmem:[%s3 + $0x148] sm:$0xff]
    %v593 = vld [vmem:[%s3 + $0x150] sm:$0xff]
    %v594 = vld [vmem:[%s3 + $0x158] sm:$0xff]
    %v595 = vld [vmem:[%s3 + $0x160] sm:$0xff]
    %v596 = vld [vmem:[%s3 + $0x168] sm:$0xff]
    %v597 = vld [vmem:[%s3 + $0x170] sm:$0xff]
    %v598 = vld [vmem:[%s3 + $0x178] sm:$0xff]
    %v599 = vld [vmem:[%s3 + $0x180] sm:$0xff]
    %v600 = vld [vmem:[%s3 + $0x188] sm:$0xff]
    %v601 = vld [vmem:[%s3 + $0x190] sm:$0xff]
    %v602 = vld [vmem:[%s3 + $0x198] sm:$0xff]
    %v603 = vld [vmem:[%s3 + $0x1a0] sm:$0xff]
    %v604 = vld [vmem:[%s3 + $0x1a8] sm:$0xff]
    %v605 = vld [vmem:[%s3 + $0x1b0] sm:$0xff]
    %v606 = vld [vmem:[%s3 + $0x1b8] sm:$0xff]
    %v607 = vld [vmem:[%s3 + $0x1c0] sm:$0xff]
    %v608 = vld [vmem:[%s3 + $0x1c8] sm:$0xff]
    %v609 = vld [vmem:[%s3 + $0x1d0] sm:$0xff]
    %v610 = vld [vmem:[%s3 + $0x1d8] sm:$0xff]
    %v611 = vld [vmem:[%s3 + $0x1e0] sm:$0xff]
    %v612 = vld [vmem:[%s3 + $0x1e8] sm:$0xff]
    %v613 = vld [vmem:[%s3 + $0x1f0] sm:$0xff]
    %v614 = vld [vmem:[%s3 + $0x1f8] sm:$0xff]
    %v615 = vld [vmem:[%s4] sm:$0x1]
    %v617 = vlaneseq
    %v618 = vshrl.u32 %v617, 7
    %v619 = vsub.s32 0, %v618
    %v620 = vrot.slane %v615, %v619
    %622 = vmatprep.subr.mxu0 0.0
    %623 = vmatpush1.msra.mxu0 %v566
    %624 = vmatprep.subr.mxu0 0.0
    %625 = vmatpush1.msra.mxu0 %v565
    %626 = vmatprep.subr.mxu0 0.0
    %627 = vmatpush1.msra.mxu0 %v564
    %628 = vmatprep.subr.mxu0 0.0
    %629 = vmatpush1.msra.mxu0 %v563
    %630 = vmatprep.subr.mxu0 0.0
    %631 = vmatpush1.msra.mxu0 %v562
    %632 = vmatprep.subr.mxu0 0.0
    %633 = vmatpush1.msra.mxu0 %v561
    %634 = vmatprep.subr.mxu0 0.0
    %635 = vmatpush1.msra.mxu0 %v560
    %636 = vmatprep.subr.mxu0 0.0
    %637 = vmatpush1.msra.mxu0 %v559
    %638 = vmatprep.subr.mxu0 0.0
    %639 = vmatpush1.msra.mxu0 %v558
    %640 = vmatprep.subr.mxu0 0.0
    %641 = vmatpush1.msra.mxu0 %v557
    %642 = vmatprep.subr.mxu0 0.0
    %643 = vmatpush1.msra.mxu0 %v556
    %644 = vmatprep.subr.mxu0 0.0
    %645 = vmatpush1.msra.mxu0 %v555
    %646 = vmatprep.subr.mxu0 0.0
    %647 = vmatpush1.msra.mxu0 %v554
    %648 = vmatprep.subr.mxu0 0.0
    %649 = vmatpush1.msra.mxu0 %v553
    %650 = vmatprep.subr.mxu0 0.0
    %651 = vmatpush1.msra.mxu0 %v552
    %652 = vmatprep.subr.mxu0 0.0
    %653 = vmatpush1.msra.mxu0 %v551
    %654 = vmatprep.subr.mxu0 0.0
    %655 = vmatpush2.msra.mxu0 %v582
    %656 = vmatprep.subr.mxu0 0.0
    %657 = vmatpush2.msra.mxu0 %v581
    %658 = vmatprep.subr.mxu0 0.0
    %659 = vmatpush2.msra.mxu0 %v580
    %660 = vmatprep.subr.mxu0 0.0
    %661 = vmatpush2.msra.mxu0 %v579
    %662 = vmatprep.subr.mxu0 0.0
    %663 = vmatpush2.msra.mxu0 %v578
    %664 = vmatprep.subr.mxu0 0.0
    %665 = vmatpush2.msra.mxu0 %v577
    %666 = vmatprep.subr.mxu0 0.0
    %667 = vmatpush2.msra.mxu0 %v576
    %668 = vmatprep.subr.mxu0 0.0
    %669 = vmatpush2.msra.mxu0 %v575
    %670 = vmatprep.subr.mxu0 0.0
    %671 = vmatpush2.msra.mxu0 %v574
    %672 = vmatprep.subr.mxu0 0.0
    %673 = vmatpush2.msra.mxu0 %v573
    %674 = vmatprep.subr.mxu0 0.0
    %675 = vmatpush2.msra.mxu0 %v572
    %676 = vmatprep.subr.mxu0 0.0
    %677 = vmatpush2.msra.mxu0 %v571
    %678 = vmatprep.subr.mxu0 0.0
    %679 = vmatpush2.msra.mxu0 %v570
    %680 = vmatprep.subr.mxu0 0.0
    %681 = vmatpush2.msra.mxu0 %v569
    %682 = vmatprep.subr.mxu0 0.0
    %683 = vmatpush2.msra.mxu0 %v568
    %684 = vmatprep.subr.mxu0 0.0
    %685 = vmatpush2.msra.mxu0 %v567
    %686 = vmatprep.mubr.f32.mxu0 %v488
    %687 = vmatmul.mubr.f32.gmra.mxu0 %v487
    %v688 = vpop.f32.mrf.mxu0
    %v689 = vadd.f32 %v620, %v688
    %v690 = vpop.f32.mrf.mxu0
    %691 = vmatprep.mubr.f32.mxu0 %v492
    %692 = vmatmul.mubr.f32.gmra.mxu0 %v491
    %v693 = vpop.f32.mrf.mxu0
    %v694 = vadd.f32 %v620, %v693
    %v695 = vpop.f32.mrf.mxu0
    %696 = vmatprep.mubr.f32.mxu0 %v496
    %697 = vmatmul.mubr.f32.gmra.mxu0 %v495
    %v698 = vpop.f32.mrf.mxu0
    %v699 = vadd.f32 %v620, %v698
    %v700 = vpop.f32.mrf.mxu0
    %701 = vmatprep.mubr.f32.mxu0 %v500
    %702 = vmatmul.mubr.f32.gmra.mxu0 %v499
    %v703 = vpop.f32.mrf.mxu0
    %v704 = vadd.f32 %v620, %v703
    %v705 = vpop.f32.mrf.mxu0
    %706 = vmatprep.mubr.f32.mxu0 %v504
    %707 = vmatmul.mubr.f32.gmra.mxu0 %v503
    %v708 = vpop.f32.mrf.mxu0
    %v709 = vadd.f32 %v620, %v708
    %v710 = vpop.f32.mrf.mxu0
    %711 = vmatprep.mubr.f32.mxu0 %v508
    %712 = vmatmul.mubr.f32.gmra.mxu0 %v507
    %v713 = vpop.f32.mrf.mxu0
    %v714 = vadd.f32 %v620, %v713
    %v715 = vpop.f32.mrf.mxu0
    %716 = vmatprep.mubr.f32.mxu0 %v512
    %717 = vmatmul.mubr.f32.gmra.mxu0 %v511
    %v718 = vpop.f32.mrf.mxu0
    %v719 = vadd.f32 %v620, %v718
    %v720 = vpop.f32.mrf.mxu0
    %721 = vmatprep.mubr.f32.mxu0 %v516
    %722 = vmatmul.mubr.f32.gmra.mxu0 %v515
    %v723 = vpop.f32.mrf.mxu0
    %v724 = vadd.f32 %v620, %v723
    %v725 = vpop.f32.mrf.mxu0
    %726 = vmatprep.mubr.f32.mxu0 %v520
    %727 = vmatmul.mubr.f32.gmra.mxu0 %v519
    %v728 = vpop.f32.mrf.mxu0
    %v729 = vadd.f32 %v620, %v728
    %v730 = vpop.f32.mrf.mxu0
    %731 = vmatprep.mubr.f32.mxu0 %v524
    %732 = vmatmul.mubr.f32.gmra.mxu0 %v523
    %v733 = vpop.f32.mrf.mxu0
    %v734 = vadd.f32 %v620, %v733
    %v735 = vpop.f32.mrf.mxu0
    %736 = vmatprep.mubr.f32.mxu0 %v528
    %737 = vmatmul.mubr.f32.gmra.mxu0 %v527
    %v738 = vpop.f32.mrf.mxu0
    %v739 = vadd.f32 %v620, %v738
    %v740 = vpop.f32.mrf.mxu0
    %741 = vmatprep.mubr.f32.mxu0 %v532
    %742 = vmatmul.mubr.f32.gmra.mxu0 %v531
    %v743 = vpop.f32.mrf.mxu0
    %v744 = vadd.f32 %v620, %v743
    %v745 = vpop.f32.mrf.mxu0
    %746 = vmatprep.mubr.f32.mxu0 %v536
    %747 = vmatmul.mubr.f32.gmra.mxu0 %v535
    %v748 = vpop.f32.mrf.mxu0
    %v749 = vadd.f32 %v620, %v748
    %v750 = vpop.f32.mrf.mxu0
    %751 = vmatprep.mubr.f32.mxu0 %v540
    %752 = vmatmul.mubr.f32.gmra.mxu0 %v539
    %v753 = vpop.f32.mrf.mxu0
    %v754 = vadd.f32 %v620, %v753
    %v755 = vpop.f32.mrf.mxu0
    %756 = vmatprep.mubr.f32.mxu0 %v544
    %757 = vmatmul.mubr.f32.gmra.mxu0 %v543
    %v758 = vpop.f32.mrf.mxu0
    %v759 = vadd.f32 %v620, %v758
    %v760 = vpop.f32.mrf.mxu0
    %761 = vmatprep.mubr.f32.mxu0 %v548
    %762 = vmatmul.mubr.f32.gmra.mxu0 %v547
    %v763 = vpop.f32.mrf.mxu0
    %v764 = vadd.f32 %v620, %v763
    %v765 = vpop.f32.mrf.mxu0
    %766 = vdwg.mxu0
    %767 = vmatprep.subr.mxu0 0.0
    %768 = vmatpush1.msra.mxu0 %v598
    %769 = vmatprep.subr.mxu0 0.0
    %770 = vmatpush1.msra.mxu0 %v597
    %771 = vmatprep.subr.mxu0 0.0
    %772 = vmatpush1.msra.mxu0 %v596
    %773 = vmatprep.subr.mxu0 0.0
    %774 = vmatpush1.msra.mxu0 %v595
    %775 = vmatprep.subr.mxu0 0.0
    %776 = vmatpush1.msra.mxu0 %v594
    %777 = vmatprep.subr.mxu0 0.0
    %778 = vmatpush1.msra.mxu0 %v593
    %779 = vmatprep.subr.mxu0 0.0
    %780 = vmatpush1.msra.mxu0 %v592
    %781 = vmatprep.subr.mxu0 0.0
    %782 = vmatpush1.msra.mxu0 %v591
    %783 = vmatprep.subr.mxu0 0.0
    %784 = vmatpush1.msra.mxu0 %v590
    %785 = vmatprep.subr.mxu0 0.0
    %786 = vmatpush1.msra.mxu0 %v589
    %787 = vmatprep.subr.mxu0 0.0
    %788 = vmatpush1.msra.mxu0 %v588
    %789 = vmatprep.subr.mxu0 0.0
    %790 = vmatpush1.msra.mxu0 %v587
    %791 = vmatprep.subr.mxu0 0.0
    %792 = vmatpush1.msra.mxu0 %v586
    %793 = vmatprep.subr.mxu0 0.0
    %794 = vmatpush1.msra.mxu0 %v585
    %795 = vmatprep.subr.mxu0 0.0
    %796 = vmatpush1.msra.mxu0 %v584
    %797 = vmatprep.subr.mxu0 0.0
    %798 = vmatpush1.msra.mxu0 %v583
    %799 = vmatprep.subr.mxu0 0.0
    %800 = vmatpush2.msra.mxu0 %v614
    %801 = vmatprep.subr.mxu0 0.0
    %802 = vmatpush2.msra.mxu0 %v613
    %803 = vmatprep.subr.mxu0 0.0
    %804 = vmatpush2.msra.mxu0 %v612
    %805 = vmatprep.subr.mxu0 0.0
    %806 = vmatpush2.msra.mxu0 %v611
    %807 = vmatprep.subr.mxu0 0.0
    %808 = vmatpush2.msra.mxu0 %v610
    %809 = vmatprep.subr.mxu0 0.0
    %810 = vmatpush2.msra.mxu0 %v609
    %811 = vmatprep.subr.mxu0 0.0
    %812 = vmatpush2.msra.mxu0 %v608
    %813 = vmatprep.subr.mxu0 0.0
    %814 = vmatpush2.msra.mxu0 %v607
    %815 = vmatprep.subr.mxu0 0.0
    %816 = vmatpush2.msra.mxu0 %v606
    %817 = vmatprep.subr.mxu0 0.0
    %818 = vmatpush2.msra.mxu0 %v605
    %819 = vmatprep.subr.mxu0 0.0
    %820 = vmatpush2.msra.mxu0 %v604
    %821 = vmatprep.subr.mxu0 0.0
    %822 = vmatpush2.msra.mxu0 %v603
    %823 = vmatprep.subr.mxu0 0.0
    %824 = vmatpush2.msra.mxu0 %v602
    %825 = vmatprep.subr.mxu0 0.0
    %826 = vmatpush2.msra.mxu0 %v601
    %827 = vmatprep.subr.mxu0 0.0
    %828 = vmatpush2.msra.mxu0 %v600
    %829 = vmatprep.subr.mxu0 0.0
    %830 = vmatpush2.msra.mxu0 %v599
    %831 = vmatprep.mubr.f32.mxu0 %v490
    %832 = vmatmul.mubr.f32.gmra.mxu0 %v489
    %v833 = vpop.f32.mrf.mxu0
    %v834 = vadd.f32 %v689, %v833
    %v835 = vpop.f32.mrf.mxu0
    %836 = vmatprep.mubr.f32.mxu0 %v494
    %837 = vmatmul.mubr.f32.gmra.mxu0 %v493
    %v838 = vpop.f32.mrf.mxu0
    %v839 = vadd.f32 %v694, %v838
    %v840 = vpop.f32.mrf.mxu0
    %841 = vmatprep.mubr.f32.mxu0 %v498
    %842 = vmatmul.mubr.f32.gmra.mxu0 %v497
    %v843 = vpop.f32.mrf.mxu0
    %v844 = vadd.f32 %v699, %v843
    %v845 = vpop.f32.mrf.mxu0
    %846 = vmatprep.mubr.f32.mxu0 %v502
    %847 = vmatmul.mubr.f32.gmra.mxu0 %v501
    %v848 = vpop.f32.mrf.mxu0
    %v849 = vadd.f32 %v704, %v848
    %v850 = vpop.f32.mrf.mxu0
    %851 = vmatprep.mubr.f32.mxu0 %v506
    %852 = vmatmul.mubr.f32.gmra.mxu0 %v505
    %v853 = vpop.f32.mrf.mxu0
    %v854 = vadd.f32 %v709, %v853
    %v855 = vpop.f32.mrf.mxu0
    %856 = vmatprep.mubr.f32.mxu0 %v510
    %857 = vmatmul.mubr.f32.gmra.mxu0 %v509
    %v858 = vpop.f32.mrf.mxu0
    %v859 = vadd.f32 %v714, %v858
    %v860 = vpop.f32.mrf.mxu0
    %861 = vmatprep.mubr.f32.mxu0 %v514
    %862 = vmatmul.mubr.f32.gmra.mxu0 %v513
    %v863 = vpop.f32.mrf.mxu0
    %v864 = vadd.f32 %v719, %v863
    %v865 = vpop.f32.mrf.mxu0
    %866 = vmatprep.mubr.f32.mxu0 %v518
    %867 = vmatmul.mubr.f32.gmra.mxu0 %v517
    %v868 = vpop.f32.mrf.mxu0
    %v869 = vadd.f32 %v724, %v868
    %v870 = vpop.f32.mrf.mxu0
    %871 = vmatprep.mubr.f32.mxu0 %v522
    %872 = vmatmul.mubr.f32.gmra.mxu0 %v521
    %v873 = vpop.f32.mrf.mxu0
    %v874 = vadd.f32 %v729, %v873
    %v875 = vpop.f32.mrf.mxu0
    %876 = vmatprep.mubr.f32.mxu0 %v526
    %877 = vmatmul.mubr.f32.gmra.mxu0 %v525
    %v878 = vpop.f32.mrf.mxu0
    %v879 = vadd.f32 %v734, %v878
    %v880 = vpop.f32.mrf.mxu0
    %881 = vmatprep.mubr.f32.mxu0 %v530
    %882 = vmatmul.mubr.f32.gmra.mxu0 %v529
    %v883 = vpop.f32.mrf.mxu0
    %v884 = vadd.f32 %v739, %v883
    %v885 = vpop.f32.mrf.mxu0
    %886 = vmatprep.mubr.f32.mxu0 %v534
    %887 = vmatmul.mubr.f32.gmra.mxu0 %v533
    %v888 = vpop.f32.mrf.mxu0
    %v889 = vadd.f32 %v744, %v888
    %v890 = vpop.f32.mrf.mxu0
    %891 = vmatprep.mubr.f32.mxu0 %v538
    %892 = vmatmul.mubr.f32.gmra.mxu0 %v537
    %v893 = vpop.f32.mrf.mxu0
    %v894 = vadd.f32 %v749, %v893
    %v895 = vpop.f32.mrf.mxu0
    %896 = vmatprep.mubr.f32.mxu0 %v542
    %897 = vmatmul.mubr.f32.gmra.mxu0 %v541
    %v898 = vpop.f32.mrf.mxu0
    %v899 = vadd.f32 %v754, %v898
    %v900 = vpop.f32.mrf.mxu0
    %901 = vmatprep.mubr.f32.mxu0 %v546
    %902 = vmatmul.mubr.f32.gmra.mxu0 %v545
    %v903 = vpop.f32.mrf.mxu0
    %v904 = vadd.f32 %v759, %v903
    %v905 = vpop.f32.mrf.mxu0
    %906 = vmatprep.mubr.f32.mxu0 %v550
    %907 = vmatmul.mubr.f32.gmra.mxu0 %v549
    %v908 = vpop.f32.mrf.mxu0
    %v909 = vadd.f32 %v764, %v908
    %v910 = vpop.f32.mrf.mxu0
    %911 = vdwg.mxu0
    %v912 = vmax.f32 %v834, 0.0
    %v913 = vmax.f32 %v839, 0.0
    %v914 = vmax.f32 %v844, 0.0
    %v915 = vmax.f32 %v849, 0.0
    %v916 = vmax.f32 %v854, 0.0
    %v917 = vmax.f32 %v859, 0.0
    %v918 = vmax.f32 %v864, 0.0
    %v919 = vmax.f32 %v869, 0.0
    %v920 = vmax.f32 %v874, 0.0
    %v921 = vmax.f32 %v879, 0.0
    %v922 = vmax.f32 %v884, 0.0
    %v923 = vmax.f32 %v889, 0.0
    %v924 = vmax.f32 %v894, 0.0
    %v925 = vmax.f32 %v899, 0.0
    %v926 = vmax.f32 %v904, 0.0
    %v927 = vmax.f32 %v909, 0.0
    %928 = vst [vmem:[#allocation2] sm:$0xff] %v912
    %929 = vst [vmem:[#allocation2 + $0x8] sm:$0xff] %v913
    %930 = vst [vmem:[#allocation2 + $0x10] sm:$0xff] %v914
    %931 = vst [vmem:[#allocation2 + $0x18] sm:$0xff] %v915
    %932 = vst [vmem:[#allocation2 + $0x20] sm:$0xff] %v916
    %933 = vst [vmem:[#allocation2 + $0x28] sm:$0xff] %v917
    %934 = vst [vmem:[#allocation2 + $0x30] sm:$0xff] %v918
    %935 = vst [vmem:[#allocation2 + $0x38] sm:$0xff] %v919
    %936 = vst [vmem:[#allocation2 + $0x40] sm:$0xff] %v920
    %937 = vst [vmem:[#allocation2 + $0x48] sm:$0xff] %v921
    %938 = vst [vmem:[#allocation2 + $0x50] sm:$0xff] %v922
    %939 = vst [vmem:[#allocation2 + $0x58] sm:$0xff] %v923
    %940 = vst [vmem:[#allocation2 + $0x60] sm:$0xff] %v924
    %941 = vst [vmem:[#allocation2 + $0x68] sm:$0xff] %v925
    %942 = vst [vmem:[#allocation2 + $0x70] sm:$0xff] %v926
    %943 = vst [vmem:[#allocation2 + $0x78] sm:$0xff] %v927
    // Predicated region
    $region22: #{model_forward.1} parent=1 // pred_check
      _
    $region23: #{model_forward.1} parent=1 // pred_check_branch
      %945 = sbr.rel (0) target = $region25
    $region24: #{model_forward.1} parent=1 // pred_region
      %s947 = ssub.s32 2048, 2048
      %948 = vsyncadd [#allocation3], %s947
      %s949 = sshll.u32 [#allocation2], 4
      %s950 = int_to_ptr.vmem [resolvable:$true] %s949
      %955 = dma.vmem_to_hbm [thread:$0]  %s950, 2048, %s5, [#allocation3], 128, 128, 8
    $region25: #{model_forward.1} parent=1 // pred_fallthru
      _
    // Predicated region
    $region26: #{model_forward.1} parent=1 // pred_check
      _
    $region27: #{model_forward.1} parent=1 // pred_check_branch
      %957 = sbr.rel (0) target = $region29
    $region28: #{model_forward.1} parent=1 // pred_region
      %958 = dma.done [#allocation3], 2048
    $region29: #{model_forward.1} parent=1 // pred_fallthru
      _
    %959 = vsyncpa [#allocation3], 1

</llo_original>
